<compile_context>
chip_gen: v5e
topology: v5e:2x2
jax: 0.10.0
libtpu: 0.0.40
codegen_flags: <defaults>
</compile_context>

<pallas_src>
import functools

import jax
import jax.numpy as jnp
from jax import lax
from jax.experimental import pallas as pl
from jax.experimental.pallas import tpu as pltpu


def _round_up(n, m):
    return ((n + m - 1) // m) * m


# ----------------------------------------------------------------------------
# Fused kernel: conv (as 2x2 taps on space-to-depth) + GAP + MLP + L2 norm
# ----------------------------------------------------------------------------
def _fused_image_model_kernel(
    x_ref,       # (1, Ho+1, Wo+1, 4*C)  space-to-depth input, top/left zero pad
    wenc_ref,    # (2, 2, 4*C, Fp)       encoder conv expressed as 2x2 s2d taps
    benc_ref,    # (1, Fp)
    w1_ref,      # (Fp, Jp)              projector 1x1 conv #1
    b1_ref,      # (1, Jp)
    w2_ref,      # (Jp, Jp)              projector 1x1 conv #2
    b2_ref,      # (1, Jp)
    patch_ref,   # (1, Ho, Wo, Fp)       encoder patch embeddings (NHWC, padded)
    pooled_ref,  # (1, 1, Fp)            global-average-pooled embedding
    proj_ref,    # (1, Ho, Wo, Jp)       projected (optionally L2-normed) patches
    *, Ho, Wo, normalize):
    S = Ho * Wo

    # --- encoder: 3x3/s2/p1 conv == 2x2/s1 conv on the space-to-depth layout ---
    acc = None
    for di in range(2):
        for dj in range(2):
            xt = x_ref[0, pl.ds(di, Ho), pl.ds(dj, Wo), :]        # (Ho, Wo, 4C)
            xt = xt.reshape(S, xt.shape[-1])                      # (S, 4C)
            part = jnp.dot(xt, wenc_ref[di, dj],
                           preferred_element_type=jnp.float32)    # (S, Fp)
            acc = part if acc is None else acc + part
    patch = jnp.maximum(acc + benc_ref[...], 0.0)                 # f32 (S, Fp)

    patch_ref[0] = patch.reshape(Ho, Wo, -1).astype(patch_ref.dtype)
    pooled_ref[0] = (jnp.sum(patch, axis=0, keepdims=True)
                     * (1.0 / S)).astype(pooled_ref.dtype)

    # --- projector MLP (1x1 convs). BatchNorm is identity at default init. ---
    # TODO(synk): fold non-trivial BN running stats / affine into w1/b1 if present.
    h = jnp.dot(patch.astype(w1_ref.dtype), w1_ref[...],
                preferred_element_type=jnp.float32) + b1_ref[...]
    h = jnp.maximum(h, 0.0)
    proj = jnp.dot(h.astype(w2_ref.dtype), w2_ref[...],
                   preferred_element_type=jnp.float32) + b2_ref[...]

    # --- optional L2 norm over channels (matches F.normalize, eps=1e-12) ---
    if normalize:
        ss = jnp.sum(proj * proj, axis=-1, keepdims=True)
        proj = proj * lax.rsqrt(jnp.maximum(ss, 1e-24))

    proj_ref[0] = proj.reshape(Ho, Wo, -1).astype(proj_ref.dtype)


# ----------------------------------------------------------------------------
# Parameters (deterministic) and forward wrapper
# ----------------------------------------------------------------------------
def init_params(key, c_in, feature_size, joint_feature_size):
    ks = jax.random.split(key, 6)
    scale = 0.1
    return {
        # encoder: Conv2d(c_in, feature_size, k=3, s=2, p=1)
        "enc_w": scale * jax.random.normal(ks[0], (feature_size, c_in, 3, 3), jnp.float32),
        "enc_b": scale * jax.random.normal(ks[1], (feature_size,), jnp.float32),
        # projector MLP with 1x1 convs: feature_size -> hidden(=joint) -> joint
        "p1_w": scale * jax.random.normal(ks[2], (joint_feature_size, feature_size, 1, 1), jnp.float32),
        "p1_b": scale * jax.random.normal(ks[3], (joint_feature_size,), jnp.float32),
        "p2_w": scale * jax.random.normal(ks[4], (joint_feature_size, joint_feature_size, 1, 1), jnp.float32),
        "p2_b": scale * jax.random.normal(ks[5], (joint_feature_size,), jnp.float32),
    }


# kernel-tap mapping for the 3x3/s2/p1 conv on the space-to-depth layout:
#   kh (or kw) -> (tap offset d in {0,1}, s2d phase p in {0,1});  kh = 2*d + p - 1
_K_TO_TAP = {0: (0, 1), 1: (1, 0), 2: (1, 1)}


def image_model_forward(params, x_nchw, normalize=True, compute_dtype=jnp.float32):
    B, C, H, W = x_nchw.shape
    assert H % 2 == 0 and W % 2 == 0
    Ho, Wo = H // 2, W // 2
    F = params["enc_w"].shape[0]
    J = params["p2_w"].shape[0]
    Fp = _round_up(F, 128)            # lane-dense channel widths
    Jp = _round_up(J, 128)
    C4 = 4 * C

    # ---- space-to-depth rearrangement (same #bytes as input; no im2col slab) ----
    x = jnp.transpose(x_nchw, (0, 2, 3, 1))                        # NHWC
    x = x.reshape(B, Ho, 2, Wo, 2, C).transpose(0, 1, 3, 2, 4, 5)  # [B,Ho,Wo,ph,pw,C]
    x = x.reshape(B, Ho, Wo, C4)
    x = jnp.pad(x, ((0, 0), (1, 0), (1, 0), (0, 0)))               # top/left zero pad
    x = x.astype(compute_dtype)

    # ---- encoder weights as 2x2 taps over the s2d layout, 128-lane padded ----
    wt = jnp.transpose(params["enc_w"], (2, 3, 1, 0))              # (3,3,C,F)
    wt = jnp.pad(wt, ((0, 0), (0, 0), (0, 0), (0, Fp - F)))        # (3,3,C,Fp)
    wenc = jnp.zeros((2, 2, 2, 2, C, Fp), jnp.float32)             # [di,dj,ph,pw,c,f]
    for kh in range(3):
        di, ph = _K_TO_TAP[kh]
        for kw in range(3):
            dj, pw = _K_TO_TAP[kw]
            wenc = wenc.at[di, dj, ph, pw].set(wt[kh, kw])
    wenc = wenc.reshape(2, 2, C4, Fp).astype(compute_dtype)

    benc = jnp.pad(params["enc_b"], (0, Fp - F)).reshape(1, Fp)                 # f32
    w1 = jnp.pad(params["p1_w"].reshape(J, F).T,
                 ((0, Fp - F), (0, Jp - J))).astype(compute_dtype)
    b1 = jnp.pad(params["p1_b"], (0, Jp - J)).reshape(1, Jp)                    # f32
    w2 = jnp.pad(params["p2_w"].reshape(J, J).T,
                 ((0, Jp - J), (0, Jp - J))).astype(compute_dtype)
    b2 = jnp.pad(params["p2_b"], (0, Jp - J)).reshape(1, Jp)                    # f32

    kernel = functools.partial(_fused_image_model_kernel,
                               Ho=Ho, Wo=Wo, normalize=normalize)
    patch_nhwc, pooled, proj = pl.pallas_call(
        kernel,
        out_shape=(
            jax.ShapeDtypeStruct((B, Ho, Wo, Fp), jnp.float32),
            jax.ShapeDtypeStruct((B, 1, Fp), jnp.float32),
            jax.ShapeDtypeStruct((B, Ho, Wo, Jp), jnp.float32),
        ),
        grid_spec=pltpu.PrefetchScalarGridSpec(
            num_scalar_prefetch=0,
            grid=(B,),
            in_specs=[
                pl.BlockSpec((1, Ho + 1, Wo + 1, C4), lambda b: (b, 0, 0, 0)),
                # weights/biases: resident (constant index_map)
                pl.BlockSpec((2, 2, C4, Fp), lambda b: (0, 0, 0, 0)),
                pl.BlockSpec((1, Fp), lambda b: (0, 0)),
                pl.BlockSpec((Fp, Jp), lambda b: (0, 0)),
                pl.BlockSpec((1, Jp), lambda b: (0, 0)),
                pl.BlockSpec((Jp, Jp), lambda b: (0, 0)),
                pl.BlockSpec((1, Jp), lambda b: (0, 0)),
            ],
            out_specs=(
                pl.BlockSpec((1, Ho, Wo, Fp), lambda b: (b, 0, 0, 0)),
                pl.BlockSpec((1, 1, Fp), lambda b: (b, 0, 0)),
                pl.BlockSpec((1, Ho, Wo, Jp), lambda b: (b, 0, 0, 0)),
            ),
        ),
        compiler_params=pltpu.CompilerParams(
            dimension_semantics=("parallel",),        # even B splits over v7x's 2 TCs
            vmem_limit_bytes=32 * 1024 * 1024,
        ),
    )(x, wenc, benc, w1, b1, w2, b2)

    # un-pad channels (no-op when F/J are already multiples of 128)
    if Fp != F:
        patch_nhwc = patch_nhwc[..., :F]
        pooled = pooled[..., :F]
    if Jp != J:
        proj = proj[..., :J]
    pooled = pooled[:, 0, :]

    # TODO(synk): downstream consumers that accept NHWC should skip this transpose.
    patch_nchw = jnp.transpose(patch_nhwc, (0, 3, 1, 2))           # [B, F, Ho, Wo]

    return {
        "patch_embeddings": patch_nchw,          # [B, F, Ho, Wo]   (PyTorch NCHW)
        "pooled_embeddings": pooled,             # [B, F]
        "projected_patch_embeddings": proj,      # [B, Ho, Wo, J]   (== permute([0,2,3,1]))
    }


# ----------------------------------------------------------------------------
# Pure-JAX reference (XLA conv) for a correctness check
# ----------------------------------------------------------------------------
def reference_forward(params, x_nchw, normalize=True):
    F = params["enc_w"].shape[0]
    J = params["p2_w"].shape[0]
    y = lax.conv_general_dilated(
        x_nchw, params["enc_w"], window_strides=(2, 2),
        padding=((1, 1), (1, 1)), dimension_numbers=("NCHW", "OIHW", "NCHW"),
        precision=lax.Precision.HIGHEST)
    patch = jnp.maximum(y + params["enc_b"][None, :, None, None], 0.0)     # [B,F,Ho,Wo]
    pooled = jnp.mean(patch, axis=(2, 3))
    p = jnp.transpose(patch, (0, 2, 3, 1))
    w1 = params["p1_w"].reshape(J, F).T
    w2 = params["p2_w"].reshape(J, J).T
    h = jnp.maximum(jnp.einsum("bhwf,fj->bhwj", p, w1,
                               precision=lax.Precision.HIGHEST) + params["p1_b"], 0.0)
    proj = jnp.einsum("bhwj,jk->bhwk", h, w2,
                      precision=lax.Precision.HIGHEST) + params["p2_b"]
    if normalize:
        nrm = jnp.sqrt(jnp.sum(proj * proj, axis=-1, keepdims=True))
        proj = proj / jnp.maximum(nrm, 1e-12)
    return {"patch_embeddings": patch, "pooled_embeddings": pooled,
            "projected_patch_embeddings": proj}


if __name__ == "__main__":
    key = jax.random.PRNGKey(0)
    k_x, k_p = jax.random.split(key)

    B, C, H, W = 2, 4, 16, 16
    feature_size = 32
    joint_feature_size = 32

    x = jax.random.normal(k_x, (B, C, H, W), jnp.float32)
    params = init_params(k_p, C, feature_size, joint_feature_size)

    out = jax.jit(image_model_forward)(params, x)
    out = jax.block_until_ready(out)

    assert out["patch_embeddings"].shape == (B, feature_size, H // 2, W // 2)
    assert out["pooled_embeddings"].shape == (B, feature_size)
    assert out["projected_patch_embeddings"].shape == (B, H // 2, W // 2, joint_feature_size)

    # correctness check against the pure-JAX reference of the same forward
    ref = jax.block_until_ready(reference_forward(params, x))
    for name in ("patch_embeddings", "pooled_embeddings", "projected_patch_embeddings"):
        err = float(jnp.max(jnp.abs(out[name] - ref[name])))
        assert err < 3e-2, (name, err)

    print("KERNEL_OK")
</pallas_src>

<mosaic_0001>
module attributes {stable_mosaic.version = 11 : i64} {
  func.func @_fused_image_model_kernel(%arg0: i32, %arg1: memref<1x9x9x16xf32, #tpu.memory_space<vmem>>, %arg2: memref<2x2x16x128xf32, #tpu.memory_space<vmem>>, %arg3: memref<1x128xf32, #tpu.memory_space<vmem>>, %arg4: memref<128x128xf32, #tpu.memory_space<vmem>>, %arg5: memref<1x128xf32, #tpu.memory_space<vmem>>, %arg6: memref<128x128xf32, #tpu.memory_space<vmem>>, %arg7: memref<1x128xf32, #tpu.memory_space<vmem>>, %arg8: memref<1x8x8x128xf32, #tpu.memory_space<vmem>>, %arg9: memref<1x1x128xf32, #tpu.memory_space<vmem>>, %arg10: memref<1x8x8x128xf32, #tpu.memory_space<vmem>>) attributes {dimension_semantics = [#tpu.dimension_semantics<parallel>], iteration_bounds = array<i64: 2>, scalar_prefetch = 0 : i64, scratch_operands = 0 : i64, tpu.core_type = #tpu.core_type<tc>, window_params = [{transform_indices = @transform_0, window_bounds = array<i64: 1, 9, 9, 16>}, {pipeline_mode = #tpu.pipeline_mode<synchronous>, transform_indices = @transform_1, window_bounds = array<i64: 2, 2, 16, 128>}, {pipeline_mode = #tpu.pipeline_mode<synchronous>, transform_indices = @transform_2, window_bounds = array<i64: 1, 128>}, {pipeline_mode = #tpu.pipeline_mode<synchronous>, transform_indices = @transform_3, window_bounds = array<i64: 128, 128>}, {pipeline_mode = #tpu.pipeline_mode<synchronous>, transform_indices = @transform_4, window_bounds = array<i64: 1, 128>}, {pipeline_mode = #tpu.pipeline_mode<synchronous>, transform_indices = @transform_5, window_bounds = array<i64: 128, 128>}, {pipeline_mode = #tpu.pipeline_mode<synchronous>, transform_indices = @transform_6, window_bounds = array<i64: 1, 128>}, {transform_indices = @transform_7, window_bounds = array<i64: 1, 8, 8, 128>}, {transform_indices = @transform_8, window_bounds = array<i64: 1, 1, 128>}, {transform_indices = @transform_9, window_bounds = array<i64: 1, 8, 8, 128>}]} {
    %c0 = arith.constant 0 : index
    %c0_0 = arith.constant 0 : index
    %c0_1 = arith.constant 0 : index
    %c0_2 = arith.constant 0 : index
    %0 = vector.load %arg1[%c0, %c0_0, %c0_1, %c0_2] : memref<1x9x9x16xf32, #tpu.memory_space<vmem>>, vector<1x8x8x16xf32>
    %1 = vector.shape_cast %0 : vector<1x8x8x16xf32> to vector<8x8x16xf32>
    %2 = vector.shape_cast %1 : vector<8x8x16xf32> to vector<64x16xf32>
    %c0_3 = arith.constant 0 : index
    %c0_4 = arith.constant 0 : index
    %c0_5 = arith.constant 0 : index
    %c0_6 = arith.constant 0 : index
    %3 = vector.load %arg2[%c0_3, %c0_4, %c0_5, %c0_6] : memref<2x2x16x128xf32, #tpu.memory_space<vmem>>, vector<1x1x16x128xf32>
    %4 = vector.shape_cast %3 : vector<1x1x16x128xf32> to vector<16x128xf32>
    %cst = arith.constant dense<0.000000e+00> : vector<64x128xf32>
    %5 = tpu.matmul %2, %4, %cst {dimension_numbers = #tpu.dot_dimension_numbers<[1], [0], [0], [1], [0, 0, 1, 1], [], []>} : vector<64x16xf32>, vector<16x128xf32>, vector<64x128xf32> -> vector<64x128xf32>
    %c0_7 = arith.constant 0 : index
    %c0_8 = arith.constant 0 : index
    %c1 = arith.constant 1 : index
    %c0_9 = arith.constant 0 : index
    %6 = vector.load %arg1[%c0_7, %c0_8, %c1, %c0_9] : memref<1x9x9x16xf32, #tpu.memory_space<vmem>>, vector<1x8x8x16xf32>
    %7 = vector.shape_cast %6 : vector<1x8x8x16xf32> to vector<8x8x16xf32>
    %8 = vector.shape_cast %7 : vector<8x8x16xf32> to vector<64x16xf32>
    %c0_10 = arith.constant 0 : index
    %c1_11 = arith.constant 1 : index
    %c0_12 = arith.constant 0 : index
    %c0_13 = arith.constant 0 : index
    %9 = vector.load %arg2[%c0_10, %c1_11, %c0_12, %c0_13] : memref<2x2x16x128xf32, #tpu.memory_space<vmem>>, vector<1x1x16x128xf32>
    %10 = vector.shape_cast %9 : vector<1x1x16x128xf32> to vector<16x128xf32>
    %cst_14 = arith.constant dense<0.000000e+00> : vector<64x128xf32>
    %11 = tpu.matmul %8, %10, %cst_14 {dimension_numbers = #tpu.dot_dimension_numbers<[1], [0], [0], [1], [0, 0, 1, 1], [], []>} : vector<64x16xf32>, vector<16x128xf32>, vector<64x128xf32> -> vector<64x128xf32>
    %12 = arith.addf %5, %11 : vector<64x128xf32>
    %c0_15 = arith.constant 0 : index
    %c1_16 = arith.constant 1 : index
    %c0_17 = arith.constant 0 : index
    %c0_18 = arith.constant 0 : index
    %13 = vector.load %arg1[%c0_15, %c1_16, %c0_17, %c0_18] : memref<1x9x9x16xf32, #tpu.memory_space<vmem>>, vector<1x8x8x16xf32>
    %14 = vector.shape_cast %13 : vector<1x8x8x16xf32> to vector<8x8x16xf32>
    %15 = vector.shape_cast %14 : vector<8x8x16xf32> to vector<64x16xf32>
    %c1_19 = arith.constant 1 : index
    %c0_20 = arith.constant 0 : index
    %c0_21 = arith.constant 0 : index
    %c0_22 = arith.constant 0 : index
    %16 = vector.load %arg2[%c1_19, %c0_20, %c0_21, %c0_22] : memref<2x2x16x128xf32, #tpu.memory_space<vmem>>, vector<1x1x16x128xf32>
    %17 = vector.shape_cast %16 : vector<1x1x16x128xf32> to vector<16x128xf32>
    %cst_23 = arith.constant dense<0.000000e+00> : vector<64x128xf32>
    %18 = tpu.matmul %15, %17, %cst_23 {dimension_numbers = #tpu.dot_dimension_numbers<[1], [0], [0], [1], [0, 0, 1, 1], [], []>} : vector<64x16xf32>, vector<16x128xf32>, vector<64x128xf32> -> vector<64x128xf32>
    %19 = arith.addf %12, %18 : vector<64x128xf32>
    %c0_24 = arith.constant 0 : index
    %c1_25 = arith.constant 1 : index
    %c1_26 = arith.constant 1 : index
    %c0_27 = arith.constant 0 : index
    %20 = vector.load %arg1[%c0_24, %c1_25, %c1_26, %c0_27] : memref<1x9x9x16xf32, #tpu.memory_space<vmem>>, vector<1x8x8x16xf32>
    %21 = vector.shape_cast %20 : vector<1x8x8x16xf32> to vector<8x8x16xf32>
    %22 = vector.shape_cast %21 : vector<8x8x16xf32> to vector<64x16xf32>
    %c1_28 = arith.constant 1 : index
    %c1_29 = arith.constant 1 : index
    %c0_30 = arith.constant 0 : index
    %c0_31 = arith.constant 0 : index
    %23 = vector.load %arg2[%c1_28, %c1_29, %c0_30, %c0_31] : memref<2x2x16x128xf32, #tpu.memory_space<vmem>>, vector<1x1x16x128xf32>
    %24 = vector.shape_cast %23 : vector<1x1x16x128xf32> to vector<16x128xf32>
    %cst_32 = arith.constant dense<0.000000e+00> : vector<64x128xf32>
    %25 = tpu.matmul %22, %24, %cst_32 {dimension_numbers = #tpu.dot_dimension_numbers<[1], [0], [0], [1], [0, 0, 1, 1], [], []>} : vector<64x16xf32>, vector<16x128xf32>, vector<64x128xf32> -> vector<64x128xf32>
    %26 = arith.addf %19, %25 : vector<64x128xf32>
    %c0_33 = arith.constant 0 : index
    %c0_34 = arith.constant 0 : index
    %27 = vector.load %arg3[%c0_33, %c0_34] : memref<1x128xf32, #tpu.memory_space<vmem>>, vector<1x128xf32>
    %28 = vector.broadcast %27 : vector<1x128xf32> to vector<64x128xf32>
    %29 = arith.addf %26, %28 : vector<64x128xf32>
    %cst_35 = arith.constant 0.000000e+00 : f32
    %30 = vector.broadcast %cst_35 : f32 to vector<64x128xf32>
    %31 = arith.maximumf %29, %30 : vector<64x128xf32>
    %32 = vector.shape_cast %31 : vector<64x128xf32> to vector<8x8x128xf32>
    %c0_36 = arith.constant 0 : index
    %c0_37 = arith.constant 0 : index
    %c0_38 = arith.constant 0 : index
    %c0_39 = arith.constant 0 : index
    %33 = vector.load %arg8[%c0_36, %c0_37, %c0_38, %c0_39] : memref<1x8x8x128xf32, #tpu.memory_space<vmem>>, vector<1x8x8x128xf32>
    %34 = vector.shape_cast %33 : vector<1x8x8x128xf32> to vector<8x8x128xf32>
    %35 = vector.shape_cast %32 : vector<8x8x128xf32> to vector<1x8x8x128xf32>
    tpu.vector_store %arg8[%c0_36, %c0_37, %c0_38, %c0_39], %35 {strides = array<i32>} : memref<1x8x8x128xf32, #tpu.memory_space<vmem>>, vector<1x8x8x128xf32>,
    %cst_40 = arith.constant dense<0.000000e+00> : vector<128xf32>
    %36 = vector.multi_reduction <add>, %31, %cst_40 [0] : vector<64x128xf32> to vector<128xf32>
    %37 = vector.shape_cast %36 : vector<128xf32> to vector<1x128xf32>
    %cst_41 = arith.constant 1.562500e-02 : f32
    %38 = vector.broadcast %cst_41 : f32 to vector<1x128xf32>
    %39 = arith.mulf %37, %38 : vector<1x128xf32>
    %c0_42 = arith.constant 0 : index
    %c0_43 = arith.constant 0 : index
    %c0_44 = arith.constant 0 : index
    %40 = vector.load %arg9[%c0_42, %c0_43, %c0_44] : memref<1x1x128xf32, #tpu.memory_space<vmem>>, vector<1x1x128xf32>
    %41 = vector.shape_cast %40 : vector<1x1x128xf32> to vector<1x128xf32>
    %42 = vector.shape_cast %39 : vector<1x128xf32> to vector<1x1x128xf32>
    tpu.vector_store %arg9[%c0_42, %c0_43, %c0_44], %42 {strides = array<i32>} : memref<1x1x128xf32, #tpu.memory_space<vmem>>, vector<1x1x128xf32>,
    %c0_45 = arith.constant 0 : index
    %c0_46 = arith.constant 0 : index
    %43 = vector.load %arg4[%c0_45, %c0_46] : memref<128x128xf32, #tpu.memory_space<vmem>>, vector<128x128xf32>
    %cst_47 = arith.constant dense<0.000000e+00> : vector<64x128xf32>
    %44 = tpu.matmul %31, %43, %cst_47 {dimension_numbers = #tpu.dot_dimension_numbers<[1], [0], [0], [1], [0, 0, 1, 1], [], []>} : vector<64x128xf32>, vector<128x128xf32>, vector<64x128xf32> -> vector<64x128xf32>
    %c0_48 = arith.constant 0 : index
    %c0_49 = arith.constant 0 : index
    %45 = vector.load %arg5[%c0_48, %c0_49] : memref<1x128xf32, #tpu.memory_space<vmem>>, vector<1x128xf32>
    %46 = vector.broadcast %45 : vector<1x128xf32> to vector<64x128xf32>
    %47 = arith.addf %44, %46 : vector<64x128xf32>
    %cst_50 = arith.constant 0.000000e+00 : f32
    %48 = vector.broadcast %cst_50 : f32 to vector<64x128xf32>
    %49 = arith.maximumf %47, %48 : vector<64x128xf32>
    %c0_51 = arith.constant 0 : index
    %c0_52 = arith.constant 0 : index
    %50 = vector.load %arg6[%c0_51, %c0_52] : memref<128x128xf32, #tpu.memory_space<vmem>>, vector<128x128xf32>
    %cst_53 = arith.constant dense<0.000000e+00> : vector<64x128xf32>
    %51 = tpu.matmul %49, %50, %cst_53 {dimension_numbers = #tpu.dot_dimension_numbers<[1], [0], [0], [1], [0, 0, 1, 1], [], []>} : vector<64x128xf32>, vector<128x128xf32>, vector<64x128xf32> -> vector<64x128xf32>
    %c0_54 = arith.constant 0 : index
    %c0_55 = arith.constant 0 : index
    %52 = vector.load %arg7[%c0_54, %c0_55] : memref<1x128xf32, #tpu.memory_space<vmem>>, vector<1x128xf32>
    %53 = vector.broadcast %52 : vector<1x128xf32> to vector<64x128xf32>
    %54 = arith.addf %51, %53 : vector<64x128xf32>
    %55 = arith.mulf %54, %54 : vector<64x128xf32>
    %cst_56 = arith.constant dense<0.000000e+00> : vector<64xf32>
    %56 = vector.multi_reduction <add>, %55, %cst_56 [1] : vector<64x128xf32> to vector<64xf32>
    %57 = vector.shape_cast %56 : vector<64xf32> to vector<64x1xf32>
    %cst_57 = arith.constant 1.000000e-24 : f32
    %58 = vector.broadcast %cst_57 : f32 to vector<64x1xf32>
    %59 = arith.maximumf %57, %58 : vector<64x1xf32>
    %60 = math.rsqrt %59 : vector<64x1xf32>
    %61 = vector.broadcast %60 : vector<64x1xf32> to vector<64x128xf32>
    %62 = arith.mulf %54, %61 : vector<64x128xf32>
    %63 = vector.shape_cast %62 : vector<64x128xf32> to vector<8x8x128xf32>
    %c0_58 = arith.constant 0 : index
    %c0_59 = arith.constant 0 : index
    %c0_60 = arith.constant 0 : index
    %c0_61 = arith.constant 0 : index
    %64 = vector.load %arg10[%c0_58, %c0_59, %c0_60, %c0_61] : memref<1x8x8x128xf32, #tpu.memory_space<vmem>>, vector<1x8x8x128xf32>
    %65 = vector.shape_cast %64 : vector<1x8x8x128xf32> to vector<8x8x128xf32>
    %66 = vector.shape_cast %63 : vector<8x8x128xf32> to vector<1x8x8x128xf32>
    tpu.vector_store %arg10[%c0_58, %c0_59, %c0_60, %c0_61], %66 {strides = array<i32>} : memref<1x8x8x128xf32, #tpu.memory_space<vmem>>, vector<1x8x8x128xf32>,
    return
  }
  func.func @transform_0(%arg0: i32) -> (i32, i32, i32, i32) {
    %c0_i32 = arith.constant 0 : i32
    %c0_i32_0 = arith.constant 0 : i32
    %c0_i32_1 = arith.constant 0 : i32
    %c0_i32_2 = arith.constant 0 : i32
    return %arg0, %c0_i32, %c0_i32_0, %c0_i32_1 : i32, i32, i32, i32
  }
  func.func @transform_1(%arg0: i32) -> (i32, i32, i32, i32) {
    %c0_i32 = arith.constant 0 : i32
    %c0_i32_0 = arith.constant 0 : i32
    %c0_i32_1 = arith.constant 0 : i32
    %c0_i32_2 = arith.constant 0 : i32
    %c0_i32_3 = arith.constant 0 : i32
    return %c0_i32, %c0_i32_0, %c0_i32_1, %c0_i32_2 : i32, i32, i32, i32
  }
  func.func @transform_2(%arg0: i32) -> (i32, i32) {
    %c0_i32 = arith.constant 0 : i32
    %c0_i32_0 = arith.constant 0 : i32
    %c0_i32_1 = arith.constant 0 : i32
    return %c0_i32, %c0_i32_0 : i32, i32
  }
  func.func @transform_3(%arg0: i32) -> (i32, i32) {
    %c0_i32 = arith.constant 0 : i32
    %c0_i32_0 = arith.constant 0 : i32
    %c0_i32_1 = arith.constant 0 : i32
    return %c0_i32, %c0_i32_0 : i32, i32
  }
  func.func @transform_4(%arg0: i32) -> (i32, i32) {
    %c0_i32 = arith.constant 0 : i32
    %c0_i32_0 = arith.constant 0 : i32
    %c0_i32_1 = arith.constant 0 : i32
    return %c0_i32, %c0_i32_0 : i32, i32
  }
  func.func @transform_5(%arg0: i32) -> (i32, i32) {
    %c0_i32 = arith.constant 0 : i32
    %c0_i32_0 = arith.constant 0 : i32
    %c0_i32_1 = arith.constant 0 : i32
    return %c0_i32, %c0_i32_0 : i32, i32
  }
  func.func @transform_6(%arg0: i32) -> (i32, i32) {
    %c0_i32 = arith.constant 0 : i32
    %c0_i32_0 = arith.constant 0 : i32
    %c0_i32_1 = arith.constant 0 : i32
    return %c0_i32, %c0_i32_0 : i32, i32
  }
  func.func @transform_7(%arg0: i32) -> (i32, i32, i32, i32) {
    %c0_i32 = arith.constant 0 : i32
    %c0_i32_0 = arith.constant 0 : i32
    %c0_i32_1 = arith.constant 0 : i32
    %c0_i32_2 = arith.constant 0 : i32
    return %arg0, %c0_i32, %c0_i32_0, %c0_i32_1 : i32, i32, i32, i32
  }
  func.func @transform_8(%arg0: i32) -> (i32, i32, i32) {
    %c0_i32 = arith.constant 0 : i32
    %c0_i32_0 = arith.constant 0 : i32
    %c0_i32_1 = arith.constant 0 : i32
    return %arg0, %c0_i32, %c0_i32_0 : i32, i32, i32
  }
  func.func @transform_9(%arg0: i32) -> (i32, i32, i32, i32) {
    %c0_i32 = arith.constant 0 : i32
    %c0_i32_0 = arith.constant 0 : i32
    %c0_i32_1 = arith.constant 0 : i32
    %c0_i32_2 = arith.constant 0 : i32
    return %arg0, %c0_i32, %c0_i32_0, %c0_i32_1 : i32, i32, i32, i32
  }
}

</mosaic_0001>

<llo_original>
// kernel: image_model_forward.1
$region0: #{image_model_forward.1}
  #allocation0 [shape = 'u32[]', space=smem, size = 0x4, offset = 0x4, fixed_abs, tag = 'smem constant byte address 0x4 - core index']
  #allocation1 [shape = 'u32[72,128]{1,0:T(1,128)}', space=vmem, size = 0x9000, scoped, tag = 'internal scratch']
  %s0 = inlined_call_operand.vmem [shape: f32[2,9,9,16], index: 0, kind: input, shape index: {}]
  %s1 = inlined_call_operand.vmem [shape: f32[2,2,16,128], index: 1, kind: input, shape index: {}]
  %s2 = inlined_call_operand.vmem [shape: f32[1,128], index: 2, kind: input, shape index: {}]
  %s3 = inlined_call_operand.vmem [shape: f32[128,128], index: 3, kind: input, shape index: {}]
  %s4 = inlined_call_operand.vmem [shape: f32[1,128], index: 4, kind: input, shape index: {}]
  %s5 = inlined_call_operand.vmem [shape: f32[128,128], index: 5, kind: input, shape index: {}]
  %s6 = inlined_call_operand.vmem [shape: f32[1,128], index: 6, kind: input, shape index: {}]
  %s7 = inlined_call_operand.vmem [shape: f32[2,8,8,128], index: 7, kind: output, shape index: {0}]
  %s8 = inlined_call_operand.hbm [shape: f32[2,1,128], index: 8, kind: output, shape index: {1}]
  %s9 = inlined_call_operand.hbm [shape: f32[2,8,8,128], index: 9, kind: output, shape index: {2}]
  %10 = xla_tuple %s7, %s8, %s9
  %s11 = sld [smem:[#allocation0]]
  $region77: #{image_model_forward.1} parent=0
    _
  %s13 = ssub.s32 1, %s11
  %s14 = scalar_select 0, %s13, %s11
  $region1: #{image_model_forward.1} parent=0
    #allocation2 [shape = 'u8[1024]{0}', space=vmem, size = 0x400, scoped, tag = 'output window, operand 1']
    #allocation3 [shape = 's32[2]{0}', space=sflag, size = 0x8, scoped, tag = 'scoped memory for image_model_forward.1']
    #allocation4 [shape = 'u8[65536]{0}', space=vmem, size = 0x10000, scoped, tag = 'output window, operand 2']
    #allocation5 [shape = 's32[2]{0}', space=sflag, size = 0x8, scoped, tag = 'scoped memory for image_model_forward.1']
    %15 = vsyncpa [#allocation3], 0
    %s16 = scalar_lea.sflag [#allocation3], 1
    %17 = vsyncpa %s16, 0
    %18 = vsyncpa [#allocation5], 0
    %s19 = scalar_lea.sflag [#allocation5], 1
    %20 = vsyncpa %s19, 0
    loop: start=0, step=1, limit=4
    $region2: #{image_model_forward.1} parent=1 // loop_pre_header
      _
    $region3: #{image_model_forward.1} parent=1 // loop_header
      %s22 = sphi 0, %s26
      %p23 = scmp.ge.s32.totalorder %s22, 4
      %s32 = sphi 0, %s34
      %s35 = sphi 0, %s32
      %s36 = sphi 0, %s35
      %s52 = sphi 0, %s36
      %s56 = sphi 0, %s56
      %s58 = sphi 0, %s56
      %s59 = sphi 0, %s58
      %s73 = sphi 0, %s59
      %s77 = sphi 0, %s77
      %s79 = sphi 0, %s77
      %s80 = sphi 0, %s79
      %s94 = sphi 0, %s80
      %s98 = sphi 0, %s98
      %s100 = sphi 0, %s98
      %s101 = sphi 0, %s100
      %s115 = sphi 0, %s101
      %s119 = sphi 0, %s119
      %s121 = sphi 0, %s119
      %s122 = sphi 0, %s121
      %s136 = sphi 0, %s122
      %s140 = sphi 0, %s140
      %s142 = sphi 0, %s140
      %s143 = sphi 0, %s142
      %s157 = sphi 0, %s143
      %s161 = sphi 0, %s161
      %s163 = sphi 0, %s161
      %s164 = sphi 0, %s163
      %s178 = sphi 0, %s164
      %s184 = sphi 0, %s186
      %s187 = sphi 0, %s184
      %s188 = sphi 0, %s187
      %s204 = sphi 0, %s188
      %s210 = sphi 0, %s212
      %s213 = sphi 0, %s210
      %s214 = sphi 0, %s213
      %s230 = sphi 0, %s214
      %s236 = sphi 0, %s238
      %s239 = sphi 0, %s236
      %s240 = sphi 0, %s239
      %s256 = sphi 0, %s240
    $region4: #{image_model_forward.1} parent=1 // loop_header_branch
      %25 = sbr.rel (%p23) target = $region8
    $region5: #{image_model_forward.1} parent=1 // loop_body
      %s27 = ssub.s32 %s22, 1
      %s28 = ssub.s32 %s22, 2
      %s29 = sadd.s32 %s22, 1
      %s30 = ssub.s32 %s22, %s29
      %p31 = scmp.eq.s32.totalorder %s30, 0
      %s33 = sadd.s32 %s32, 1
      %s34 = scalar_select %p31, %s32, %s33
      %p37 = pneg %p31
      %p38 = scmp.eq.s32.totalorder %s22, 1
      %p39 = por %p37, %p38
      %p40 = scmp.ne.s32.totalorder %s32, %s35
      %p41 = scmp.eq.s32.totalorder %s22, 0
      %p42 = por %p40, %p41
      %p43 = scmp.ne.s32.totalorder %s32, %s35
      %p44 = scmp.eq.s32.totalorder %s27, 1
      %p45 = por %p43, %p44
      %p46 = scmp.ne.s32.totalorder %s35, %s36
      %p47 = scmp.eq.s32.totalorder %s27, 0
      %p48 = por %p46, %p47
      %p49 = scmp.ne.s32.totalorder %s35, %s36
      %p50 = scmp.eq.s32.totalorder %s28, 1
      %p51 = por %p49, %p50
      %p53 = scmp.ne.s32.totalorder %s36, %s52
      %p54 = scmp.eq.s32.totalorder %s28, 0
      %p55 = por %p53, %p54
      %s57 = sadd.s32 %s56, 1
      %p60 = scmp.eq.s32.totalorder %s22, 1
      %p61 = scmp.ne.s32.totalorder %s56, %s58
      %p62 = scmp.eq.s32.totalorder %s22, 0
      %p63 = por %p61, %p62
      %p64 = scmp.ne.s32.totalorder %s56, %s58
      %p65 = scmp.eq.s32.totalorder %s27, 1
      %p66 = por %p64, %p65
      %p67 = scmp.ne.s32.totalorder %s58, %s59
      %p68 = scmp.eq.s32.totalorder %s27, 0
      %p69 = por %p67, %p68
      %p70 = scmp.ne.s32.totalorder %s58, %s59
      %p71 = scmp.eq.s32.totalorder %s28, 1
      %p72 = por %p70, %p71
      %p74 = scmp.ne.s32.totalorder %s59, %s73
      %p75 = scmp.eq.s32.totalorder %s28, 0
      %p76 = por %p74, %p75
      %s78 = sadd.s32 %s77, 1
      %p81 = scmp.eq.s32.totalorder %s22, 1
      %p82 = scmp.ne.s32.totalorder %s77, %s79
      %p83 = scmp.eq.s32.totalorder %s22, 0
      %p84 = por %p82, %p83
      %p85 = scmp.ne.s32.totalorder %s77, %s79
      %p86 = scmp.eq.s32.totalorder %s27, 1
      %p87 = por %p85, %p86
      %p88 = scmp.ne.s32.totalorder %s79, %s80
      %p89 = scmp.eq.s32.totalorder %s27, 0
      %p90 = por %p88, %p89
      %p91 = scmp.ne.s32.totalorder %s79, %s80
      %p92 = scmp.eq.s32.totalorder %s28, 1
      %p93 = por %p91, %p92
      %p95 = scmp.ne.s32.totalorder %s80, %s94
      %p96 = scmp.eq.s32.totalorder %s28, 0
      %p97 = por %p95, %p96
      %s99 = sadd.s32 %s98, 1
      %p102 = scmp.eq.s32.totalorder %s22, 1
      %p103 = scmp.ne.s32.totalorder %s98, %s100
      %p104 = scmp.eq.s32.totalorder %s22, 0
      %p105 = por %p103, %p104
      %p106 = scmp.ne.s32.totalorder %s98, %s100
      %p107 = scmp.eq.s32.totalorder %s27, 1
      %p108 = por %p106, %p107
      %p109 = scmp.ne.s32.totalorder %s100, %s101
      %p110 = scmp.eq.s32.totalorder %s27, 0
      %p111 = por %p109, %p110
      %p112 = scmp.ne.s32.totalorder %s100, %s101
      %p113 = scmp.eq.s32.totalorder %s28, 1
      %p114 = por %p112, %p113
      %p116 = scmp.ne.s32.totalorder %s101, %s115
      %p117 = scmp.eq.s32.totalorder %s28, 0
      %p118 = por %p116, %p117
      %s120 = sadd.s32 %s119, 1
      %p123 = scmp.eq.s32.totalorder %s22, 1
      %p124 = scmp.ne.s32.totalorder %s119, %s121
      %p125 = scmp.eq.s32.totalorder %s22, 0
      %p126 = por %p124, %p125
      %p127 = scmp.ne.s32.totalorder %s119, %s121
      %p128 = scmp.eq.s32.totalorder %s27, 1
      %p129 = por %p127, %p128
      %p130 = scmp.ne.s32.totalorder %s121, %s122
      %p131 = scmp.eq.s32.totalorder %s27, 0
      %p132 = por %p130, %p131
      %p133 = scmp.ne.s32.totalorder %s121, %s122
      %p134 = scmp.eq.s32.totalorder %s28, 1
      %p135 = por %p133, %p134
      %p137 = scmp.ne.s32.totalorder %s122, %s136
      %p138 = scmp.eq.s32.totalorder %s28, 0
      %p139 = por %p137, %p138
      %s141 = sadd.s32 %s140, 1
      %p144 = scmp.eq.s32.totalorder %s22, 1
      %p145 = scmp.ne.s32.totalorder %s140, %s142
      %p146 = scmp.eq.s32.totalorder %s22, 0
      %p147 = por %p145, %p146
      %p148 = scmp.ne.s32.totalorder %s140, %s142
      %p149 = scmp.eq.s32.totalorder %s27, 1
      %p150 = por %p148, %p149
      %p151 = scmp.ne.s32.totalorder %s142, %s143
      %p152 = scmp.eq.s32.totalorder %s27, 0
      %p153 = por %p151, %p152
      %p154 = scmp.ne.s32.totalorder %s142, %s143
      %p155 = scmp.eq.s32.totalorder %s28, 1
      %p156 = por %p154, %p155
      %p158 = scmp.ne.s32.totalorder %s143, %s157
      %p159 = scmp.eq.s32.totalorder %s28, 0
      %p160 = por %p158, %p159
      %s162 = sadd.s32 %s161, 1
      %p165 = scmp.eq.s32.totalorder %s22, 1
      %p166 = scmp.ne.s32.totalorder %s161, %s163
      %p167 = scmp.eq.s32.totalorder %s22, 0
      %p168 = por %p166, %p167
      %p169 = scmp.ne.s32.totalorder %s161, %s163
      %p170 = scmp.eq.s32.totalorder %s27, 1
      %p171 = por %p169, %p170
      %p172 = scmp.ne.s32.totalorder %s163, %s164
      %p173 = scmp.eq.s32.totalorder %s27, 0
      %p174 = por %p172, %p173
      %p175 = scmp.ne.s32.totalorder %s163, %s164
      %p176 = scmp.eq.s32.totalorder %s28, 1
      %p177 = por %p175, %p176
      %p179 = scmp.ne.s32.totalorder %s164, %s178
      %p180 = scmp.eq.s32.totalorder %s28, 0
      %p181 = por %p179, %p180
      %s182 = ssub.s32 %s22, %s29
      %p183 = scmp.eq.s32.totalorder %s182, 0
      %s185 = sadd.s32 %s184, 1
      %s186 = scalar_select %p183, %s184, %s185
      %p189 = pneg %p183
      %p190 = scmp.eq.s32.totalorder %s22, 1
      %p191 = por %p189, %p190
      %p192 = scmp.ne.s32.totalorder %s184, %s187
      %p193 = scmp.eq.s32.totalorder %s22, 0
      %p194 = por %p192, %p193
      %p195 = scmp.ne.s32.totalorder %s184, %s187
      %p196 = scmp.eq.s32.totalorder %s27, 1
      %p197 = por %p195, %p196
      %p198 = scmp.ne.s32.totalorder %s187, %s188
      %p199 = scmp.eq.s32.totalorder %s27, 0
      %p200 = por %p198, %p199
      %p201 = scmp.ne.s32.totalorder %s187, %s188
      %p202 = scmp.eq.s32.totalorder %s28, 1
      %p203 = por %p201, %p202
      %p205 = scmp.ne.s32.totalorder %s188, %s204
      %p206 = scmp.eq.s32.totalorder %s28, 0
      %p207 = por %p205, %p206
      %s208 = ssub.s32 %s22, %s29
      %p209 = scmp.eq.s32.totalorder %s208, 0
      %s211 = sadd.s32 %s210, 1
      %s212 = scalar_select %p209, %s210, %s211
      %p215 = pneg %p209
      %p216 = scmp.eq.s32.totalorder %s22, 1
      %p217 = por %p215, %p216
      %p218 = scmp.ne.s32.totalorder %s210, %s213
      %p219 = scmp.eq.s32.totalorder %s22, 0
      %p220 = por %p218, %p219
      %p221 = scmp.ne.s32.totalorder %s210, %s213
      %p222 = scmp.eq.s32.totalorder %s27, 1
      %p223 = por %p221, %p222
      %p224 = scmp.ne.s32.totalorder %s213, %s214
      %p225 = scmp.eq.s32.totalorder %s27, 0
      %p226 = por %p224, %p225
      %p227 = scmp.ne.s32.totalorder %s213, %s214
      %p228 = scmp.eq.s32.totalorder %s28, 1
      %p229 = por %p227, %p228
      %p231 = scmp.ne.s32.totalorder %s214, %s230
      %p232 = scmp.eq.s32.totalorder %s28, 0
      %p233 = por %p231, %p232
      %s234 = ssub.s32 %s22, %s29
      %p235 = scmp.eq.s32.totalorder %s234, 0
      %s237 = sadd.s32 %s236, 1
      %s238 = scalar_select %p235, %s236, %s237
      %p241 = pneg %p235
      %p242 = scmp.eq.s32.totalorder %s22, 1
      %p243 = por %p241, %p242
      %p244 = scmp.ne.s32.totalorder %s236, %s239
      %p245 = scmp.eq.s32.totalorder %s22, 0
      %p246 = por %p244, %p245
      %p247 = scmp.ne.s32.totalorder %s236, %s239
      %p248 = scmp.eq.s32.totalorder %s27, 1
      %p249 = por %p247, %p248
      %p250 = scmp.ne.s32.totalorder %s239, %s240
      %p251 = scmp.eq.s32.totalorder %s27, 0
      %p252 = por %p250, %p251
      %p253 = scmp.ne.s32.totalorder %s239, %s240
      %p254 = scmp.eq.s32.totalorder %s28, 1
      %p255 = por %p253, %p254
      %p257 = scmp.ne.s32.totalorder %s240, %s256
      %p258 = scmp.eq.s32.totalorder %s28, 0
      %p259 = por %p257, %p258
      %p260 = scmp.le.s32.totalorder 1, %s22
      %p261 = scmp.lt.s32.totalorder %s22, 3
      %p262 = pnand %p260, %p261
      %p263 = pneg %p262
      // Predicated region
      $region9: #{image_model_forward.1} parent=5 // pred_check
        _
      $region10: #{image_model_forward.1} parent=5 // pred_check_branch
        %265 = sbr.rel (%p262) target = $region12
      $region11: #{image_model_forward.1} parent=5 // pred_region
        %s266 = ssub.s32 %s22, 1
        // Predicated region
        $region13: #{image_model_forward.1} parent=11 // pred_check
          %p267 = pneg %p69
        $region14: #{image_model_forward.1} parent=11 // pred_check_branch
          %269 = sbr.rel (%p267) target = $region16
        $region15: #{image_model_forward.1} parent=11 // pred_region
          _
        $region16: #{image_model_forward.1} parent=11 // pred_fallthru
          _
        // Predicated region
        $region17: #{image_model_forward.1} parent=11 // pred_check
          %p270 = pneg %p90
        $region18: #{image_model_forward.1} parent=11 // pred_check_branch
          %272 = sbr.rel (%p270) target = $region20
        $region19: #{image_model_forward.1} parent=11 // pred_region
          _
        $region20: #{image_model_forward.1} parent=11 // pred_fallthru
          _
        // Predicated region
        $region21: #{image_model_forward.1} parent=11 // pred_check
          %p273 = pneg %p111
        $region22: #{image_model_forward.1} parent=11 // pred_check_branch
          %275 = sbr.rel (%p273) target = $region24
        $region23: #{image_model_forward.1} parent=11 // pred_region
          _
        $region24: #{image_model_forward.1} parent=11 // pred_fallthru
          _
        // Predicated region
        $region25: #{image_model_forward.1} parent=11 // pred_check
          %p276 = pneg %p132
        $region26: #{image_model_forward.1} parent=11 // pred_check_branch
          %278 = sbr.rel (%p276) target = $region28
        $region27: #{image_model_forward.1} parent=11 // pred_region
          _
        $region28: #{image_model_forward.1} parent=11 // pred_fallthru
          _
        // Predicated region
        $region29: #{image_model_forward.1} parent=11 // pred_check
          %p279 = pneg %p153
        $region30: #{image_model_forward.1} parent=11 // pred_check_branch
          %281 = sbr.rel (%p279) target = $region32
        $region31: #{image_model_forward.1} parent=11 // pred_region
          _
        $region32: #{image_model_forward.1} parent=11 // pred_fallthru
          _
        // Predicated region
        $region33: #{image_model_forward.1} parent=11 // pred_check
          %p282 = pneg %p174
        $region34: #{image_model_forward.1} parent=11 // pred_check_branch
          %284 = sbr.rel (%p282) target = $region36
        $region35: #{image_model_forward.1} parent=11 // pred_region
          _
        $region36: #{image_model_forward.1} parent=11 // pred_fallthru
          _
      $region12: #{image_model_forward.1} parent=5 // pred_fallthru
        _
      %p285 = scmp.lt.s32.totalorder %s22, 2
      // Predicated region
      $region37: #{image_model_forward.1} parent=5 // pred_check
        %p286 = pneg %p285
      $region38: #{image_model_forward.1} parent=5 // pred_check_branch
        %288 = sbr.rel (%p286) target = $region40
      $region39: #{image_model_forward.1} parent=5 // pred_region
        // Predicated region
        $region41: #{image_model_forward.1} parent=39 // pred_check
          %p289 = pneg %p42
        $region42: #{image_model_forward.1} parent=39 // pred_check_branch
          %291 = sbr.rel (%p289) target = $region44
        $region43: #{image_model_forward.1} parent=39 // pred_region
          %p292 = scmp.lt.s32.totalorder %s22, 1
          %s293 = scalar_select %p292, %s22, 1
          %s294 = smul.addr %s293, 18
          %s295 = smul.addr %s294, 8
          %s296 = scalar_lea.vmem %s0, %s295
        $region44: #{image_model_forward.1} parent=39 // pred_fallthru
          _
      $region40: #{image_model_forward.1} parent=5 // pred_fallthru
        _
      %p297 = scmp.le.s32.totalorder 1, %s22
      %p298 = scmp.lt.s32.totalorder %s22, 3
      %p299 = pnand %p297, %p298
      %p300 = pneg %p299
      // Predicated region
      $region45: #{image_model_forward.1} parent=5 // pred_check
        _
      $region46: #{image_model_forward.1} parent=5 // pred_check_branch
        %302 = sbr.rel (%p299) target = $region48
      $region47: #{image_model_forward.1} parent=5 // pred_region
        %s303 = ssub.s32 %s22, 1
        %p304 = scmp.lt.s32.totalorder %s27, 1
        %s305 = scalar_select %p304, %s27, 1
        %s306 = smul.addr %s305, 18
        %s307 = smul.addr %s306, 8
        %s308 = scalar_lea.vmem %s0, %s307
        %p309 = pneg %p48
        %p310 = pneg %p45
        %p311 = pneg %p69
        %p312 = pneg %p66
        %p313 = pneg %p90
        %p314 = pneg %p87
        %p315 = pneg %p111
        %p316 = pneg %p108
        %p317 = pneg %p132
        %p318 = pneg %p129
        %p319 = pneg %p153
        %p320 = pneg %p150
        %p321 = pneg %p174
        %p322 = pneg %p171
        %p323 = pneg %p200
        %p324 = pneg %p197
        %p325 = scmp.lt.s32.totalorder %s27, 1
        %s326 = scalar_select %p325, %s27, 1
        %s327 = smul.addr %s326, 8
        %s328 = smul.addr %s327, 8
        %s329 = scalar_lea.vmem %s7, %s328
        %p330 = pneg %p226
        %p331 = pneg %p223
        %s332 = sand.u32 %s213, 1
        %s333 = scalar_lea.sflag [#allocation3], %s332
        %s334 = sand.u32 %s213, 1
        %s335 = scalar_lea.vmem [#allocation2], %s334
        %p336 = pneg %p252
        %p337 = pneg %p249
        %s338 = sand.u32 %s239, 1
        %s339 = scalar_lea.sflag [#allocation5], %s338
        %s340 = sand.u32 %s239, 1
        %s341 = smul.addr %s340, 64
        %s342 = scalar_lea.vmem [#allocation4], %s341
        %p343 = scmp.lt.s32.totalorder %s27, 1
        %s344 = scalar_select %p343, %s27, 1
        %s345 = smul.addr %s344, 18
        %s346 = smul.addr %s345, 8
        %s347 = scalar_lea.vmem %s0, %s346
        %p348 = scmp.lt.s32.totalorder %s27, 1
        %s349 = scalar_select %p348, %s27, 1
        %s350 = smul.addr %s349, 8
        %s351 = smul.addr %s350, 8
        %s352 = scalar_lea.vmem %s7, %s351
        %v353 = vld [vmem:[%s347] sm:$0xff]
        %v354 = vld [vmem:[%s347 + $0x10] sm:$0xff]
        %v355 = vld [vmem:[%s347 + $0x20] sm:$0xff]
        %v356 = vld [vmem:[%s347 + $0x30] sm:$0xff]
        %v357 = vld [vmem:[%s347 + $0x40] sm:$0xff]
        %v358 = vld [vmem:[%s347 + $0x50] sm:$0xff]
        %v359 = vld [vmem:[%s347 + $0x60] sm:$0xff]
        %v360 = vld [vmem:[%s347 + $0x70] sm:$0xff]
        %v361 = vld [vmem:[%s1] sm:$0xff]
        %v362 = vld [vmem:[%s1 + $0x8] sm:$0xff]
        %v363 = vld [vmem:[%s347 + $0x1] sm:$0xff]
        %v364 = vld [vmem:[%s347 + $0x11] sm:$0xff]
        %v365 = vld [vmem:[%s347 + $0x21] sm:$0xff]
        %v366 = vld [vmem:[%s347 + $0x31] sm:$0xff]
        %v367 = vld [vmem:[%s347 + $0x41] sm:$0xff]
        %v368 = vld [vmem:[%s347 + $0x51] sm:$0xff]
        %v369 = vld [vmem:[%s347 + $0x61] sm:$0xff]
        %v370 = vld [vmem:[%s347 + $0x71] sm:$0xff]
        %s371 = scalar_lea.vmem %s1, 16
        %v372 = vld [vmem:[%s371] sm:$0xff]
        %v373 = vld [vmem:[%s371 + $0x8] sm:$0xff]
        %vm374 = vcmask 130048
        %v376 = vsel %vm374, %v363, 0
        %v379 = vsel %vm374, %v364, 0
        %v382 = vsel %vm374, %v365, 0
        %v385 = vsel %vm374, %v366, 0
        %v388 = vsel %vm374, %v367, 0
        %v391 = vsel %vm374, %v368, 0
        %v394 = vsel %vm374, %v369, 0
        %v397 = vsel %vm374, %v370, 0
        %399 = vmatpush.msra.mxu0 0.0
        %400 = vmatpush.msra.mxu0 0.0
        %401 = vmatpush.msra.mxu0 0.0
        %402 = vmatpush.msra.mxu0 0.0
        %403 = vmatpush.msra.mxu0 0.0
        %404 = vmatpush.msra.mxu0 0.0
        %405 = vmatpush.msra.mxu0 0.0
        %406 = vmatpush.msra.mxu0 0.0
        %407 = vmatpush.msra.mxu0 0.0
        %408 = vmatpush.msra.mxu0 0.0
        %409 = vmatpush.msra.mxu0 0.0
        %410 = vmatpush.msra.mxu0 0.0
        %411 = vmatpush.msra.mxu0 0.0
        %412 = vmatpush.msra.mxu0 0.0
        %413 = vmatpush.msra.mxu0 %v373
        %414 = vmatpush.msra.mxu0 %v372
        %415 = vmatmul.f32.gmra.mxu0 %v376
        %v416 = vpop.f32.mrf.mxu0
        %v417 = vadd.f32 0.0, %v416
        %418 = vmatmul.f32.gmra.mxu0 %v379
        %v419 = vpop.f32.mrf.mxu0
        %v420 = vadd.f32 0.0, %v419
        %421 = vmatmul.f32.gmra.mxu0 %v382
        %v422 = vpop.f32.mrf.mxu0
        %v423 = vadd.f32 0.0, %v422
        %424 = vmatmul.f32.gmra.mxu0 %v385
        %v425 = vpop.f32.mrf.mxu0
        %v426 = vadd.f32 0.0, %v425
        %427 = vmatmul.f32.gmra.mxu0 %v388
        %v428 = vpop.f32.mrf.mxu0
        %v429 = vadd.f32 0.0, %v428
        %430 = vmatmul.f32.gmra.mxu0 %v391
        %v431 = vpop.f32.mrf.mxu0
        %v432 = vadd.f32 0.0, %v431
        %433 = vmatmul.f32.gmra.mxu0 %v394
        %v434 = vpop.f32.mrf.mxu0
        %v435 = vadd.f32 0.0, %v434
        %436 = vmatmul.f32.gmra.mxu0 %v397
        %v437 = vpop.f32.mrf.mxu0
        %v438 = vadd.f32 0.0, %v437
        %439 = vdwg.mxu0
        %v441 = vsel %vm374, %v353, 0
        %v444 = vsel %vm374, %v354, 0
        %v447 = vsel %vm374, %v355, 0
        %v450 = vsel %vm374, %v356, 0
        %v453 = vsel %vm374, %v357, 0
        %v456 = vsel %vm374, %v358, 0
        %v459 = vsel %vm374, %v359, 0
        %v462 = vsel %vm374, %v360, 0
        %464 = vmatpush.msra.mxu0 0.0
        %465 = vmatpush.msra.mxu0 0.0
        %466 = vmatpush.msra.mxu0 0.0
        %467 = vmatpush.msra.mxu0 0.0
        %468 = vmatpush.msra.mxu0 0.0
        %469 = vmatpush.msra.mxu0 0.0
        %470 = vmatpush.msra.mxu0 0.0
        %471 = vmatpush.msra.mxu0 0.0
        %472 = vmatpush.msra.mxu0 0.0
        %473 = vmatpush.msra.mxu0 0.0
        %474 = vmatpush.msra.mxu0 0.0
        %475 = vmatpush.msra.mxu0 0.0
        %476 = vmatpush.msra.mxu0 0.0
        %477 = vmatpush.msra.mxu0 0.0
        %478 = vmatpush.msra.mxu0 %v362
        %479 = vmatpush.msra.mxu0 %v361
        %480 = vmatmul.f32.gmra.mxu0 %v441
        %v481 = vpop.f32.mrf.mxu0
        %v482 = vadd.f32 %v417, %v481
        %483 = vmatmul.f32.gmra.mxu0 %v444
        %v484 = vpop.f32.mrf.mxu0
        %v485 = vadd.f32 %v420, %v484
        %486 = vmatmul.f32.gmra.mxu0 %v447
        %v487 = vpop.f32.mrf.mxu0
        %v488 = vadd.f32 %v423, %v487
        %489 = vmatmul.f32.gmra.mxu0 %v450
        %v490 = vpop.f32.mrf.mxu0
        %v491 = vadd.f32 %v426, %v490
        %492 = vmatmul.f32.gmra.mxu0 %v453
        %v493 = vpop.f32.mrf.mxu0
        %v494 = vadd.f32 %v429, %v493
        %495 = vmatmul.f32.gmra.mxu0 %v456
        %v496 = vpop.f32.mrf.mxu0
        %v497 = vadd.f32 %v432, %v496
        %498 = vmatmul.f32.gmra.mxu0 %v459
        %v499 = vpop.f32.mrf.mxu0
        %v500 = vadd.f32 %v435, %v499
        %501 = vmatmul.f32.gmra.mxu0 %v462
        %v502 = vpop.f32.mrf.mxu0
        %v503 = vadd.f32 %v438, %v502
        %504 = vdwg.mxu0
        %s505 = scalar_lea.vmem %s347, 16
        %v506 = vld [vmem:[%s505] sm:$0xff]
        %v507 = vld [vmem:[%s505 + $0x10] sm:$0xff]
        %v508 = vld [vmem:[%s505 + $0x20] sm:$0xff]
        %v509 = vld [vmem:[%s505 + $0x30] sm:$0xff]
        %v510 = vld [vmem:[%s505 + $0x40] sm:$0xff]
        %v511 = vld [vmem:[%s505 + $0x50] sm:$0xff]
        %v512 = vld [vmem:[%s505 + $0x60] sm:$0xff]
        %v513 = vld [vmem:[%s505 + $0x70] sm:$0xff]
        %s514 = scalar_lea.vmem %s1, 32
        %v515 = vld [vmem:[%s514] sm:$0xff]
        %v516 = vld [vmem:[%s514 + $0x8] sm:$0xff]
        %v518 = vsel %vm374, %v506, 0
        %v521 = vsel %vm374, %v507, 0
        %v524 = vsel %vm374, %v508, 0
        %v527 = vsel %vm374, %v509, 0
        %v530 = vsel %vm374, %v510, 0
        %v533 = vsel %vm374, %v511, 0
        %v536 = vsel %vm374, %v512, 0
        %v539 = vsel %vm374, %v513, 0
        %541 = vmatpush.msra.mxu0 0.0
        %542 = vmatpush.msra.mxu0 0.0
        %543 = vmatpush.msra.mxu0 0.0
        %544 = vmatpush.msra.mxu0 0.0
        %545 = vmatpush.msra.mxu0 0.0
        %546 = vmatpush.msra.mxu0 0.0
        %547 = vmatpush.msra.mxu0 0.0
        %548 = vmatpush.msra.mxu0 0.0
        %549 = vmatpush.msra.mxu0 0.0
        %550 = vmatpush.msra.mxu0 0.0
        %551 = vmatpush.msra.mxu0 0.0
        %552 = vmatpush.msra.mxu0 0.0
        %553 = vmatpush.msra.mxu0 0.0
        %554 = vmatpush.msra.mxu0 0.0
        %555 = vmatpush.msra.mxu0 %v516
        %556 = vmatpush.msra.mxu0 %v515
        %557 = vmatmul.f32.gmra.mxu0 %v518
        %v558 = vpop.f32.mrf.mxu0
        %v559 = vadd.f32 0.0, %v558
        %560 = vmatmul.f32.gmra.mxu0 %v521
        %v561 = vpop.f32.mrf.mxu0
        %v562 = vadd.f32 0.0, %v561
        %563 = vmatmul.f32.gmra.mxu0 %v524
        %v564 = vpop.f32.mrf.mxu0
        %v565 = vadd.f32 0.0, %v564
        %566 = vmatmul.f32.gmra.mxu0 %v527
        %v567 = vpop.f32.mrf.mxu0
        %v568 = vadd.f32 0.0, %v567
        %569 = vmatmul.f32.gmra.mxu0 %v530
        %v570 = vpop.f32.mrf.mxu0
        %v571 = vadd.f32 0.0, %v570
        %572 = vmatmul.f32.gmra.mxu0 %v533
        %v573 = vpop.f32.mrf.mxu0
        %v574 = vadd.f32 0.0, %v573
        %575 = vmatmul.f32.gmra.mxu0 %v536
        %v576 = vpop.f32.mrf.mxu0
        %v577 = vadd.f32 0.0, %v576
        %578 = vmatmul.f32.gmra.mxu0 %v539
        %v579 = vpop.f32.mrf.mxu0
        %v580 = vadd.f32 0.0, %v579
        %581 = vdwg.mxu0
        %v582 = vadd.f32 %v482, %v559
        %v583 = vadd.f32 %v485, %v562
        %v584 = vadd.f32 %v488, %v565
        %v585 = vadd.f32 %v491, %v568
        %v586 = vadd.f32 %v494, %v571
        %v587 = vadd.f32 %v497, %v574
        %v588 = vadd.f32 %v500, %v577
        %v589 = vadd.f32 %v503, %v580
        %v590 = vld [vmem:[%s505 + $0x1] sm:$0xff]
        %v591 = vld [vmem:[%s505 + $0x11] sm:$0xff]
        %v592 = vld [vmem:[%s505 + $0x21] sm:$0xff]
        %v593 = vld [vmem:[%s505 + $0x31] sm:$0xff]
        %v594 = vld [vmem:[%s505 + $0x41] sm:$0xff]
        %v595 = vld [vmem:[%s505 + $0x51] sm:$0xff]
        %v596 = vld [vmem:[%s505 + $0x61] sm:$0xff]
        %v597 = vld [vmem:[%s505 + $0x71] sm:$0xff]
        %s598 = scalar_lea.vmem %s1, 48
        %v599 = vld [vmem:[%s598] sm:$0xff]
        %v600 = vld [vmem:[%s598 + $0x8] sm:$0xff]
        %v602 = vsel %vm374, %v590, 0
        %v605 = vsel %vm374, %v591, 0
        %v608 = vsel %vm374, %v592, 0
        %v611 = vsel %vm374, %v593, 0
        %v614 = vsel %vm374, %v594, 0
        %v617 = vsel %vm374, %v595, 0
        %v620 = vsel %vm374, %v596, 0
        %v623 = vsel %vm374, %v597, 0
        %625 = vmatpush.msra.mxu0 0.0
        %626 = vmatpush.msra.mxu0 0.0
        %627 = vmatpush.msra.mxu0 0.0
        %628 = vmatpush.msra.mxu0 0.0
        %629 = vmatpush.msra.mxu0 0.0
        %630 = vmatpush.msra.mxu0 0.0
        %631 = vmatpush.msra.mxu0 0.0
        %632 = vmatpush.msra.mxu0 0.0
        %633 = vmatpush.msra.mxu0 0.0
        %634 = vmatpush.msra.mxu0 0.0
        %635 = vmatpush.msra.mxu0 0.0
        %636 = vmatpush.msra.mxu0 0.0
        %637 = vmatpush.msra.mxu0 0.0
        %638 = vmatpush.msra.mxu0 0.0
        %639 = vmatpush.msra.mxu0 %v600
        %640 = vmatpush.msra.mxu0 %v599
        %641 = vmatmul.f32.gmra.mxu0 %v602
        %v642 = vpop.f32.mrf.mxu0
        %v643 = vadd.f32 0.0, %v642
        %644 = vmatmul.f32.gmra.mxu0 %v605
        %v645 = vpop.f32.mrf.mxu0
        %v646 = vadd.f32 0.0, %v645
        %647 = vmatmul.f32.gmra.mxu0 %v608
        %v648 = vpop.f32.mrf.mxu0
        %v649 = vadd.f32 0.0, %v648
        %650 = vmatmul.f32.gmra.mxu0 %v611
        %v651 = vpop.f32.mrf.mxu0
        %v652 = vadd.f32 0.0, %v651
        %653 = vmatmul.f32.gmra.mxu0 %v614
        %v654 = vpop.f32.mrf.mxu0
        %v655 = vadd.f32 0.0, %v654
        %656 = vmatmul.f32.gmra.mxu0 %v617
        %v657 = vpop.f32.mrf.mxu0
        %v658 = vadd.f32 0.0, %v657
        %659 = vmatmul.f32.gmra.mxu0 %v620
        %v660 = vpop.f32.mrf.mxu0
        %v661 = vadd.f32 0.0, %v660
        %662 = vmatmul.f32.gmra.mxu0 %v623
        %v663 = vpop.f32.mrf.mxu0
        %v664 = vadd.f32 0.0, %v663
        %665 = vdwg.mxu0
        %v666 = vadd.f32 %v582, %v643
        %v667 = vadd.f32 %v583, %v646
        %v668 = vadd.f32 %v584, %v649
        %v669 = vadd.f32 %v585, %v652
        %v670 = vadd.f32 %v586, %v655
        %v671 = vadd.f32 %v587, %v658
        %v672 = vadd.f32 %v588, %v661
        %v673 = vadd.f32 %v589, %v664
        %v674 = vld [vmem:[%s2] sm:$0x1]
        %v676 = vperm.slane %v674, 0
        %v678 = vadd.f32 %v666, %v676
        %v679 = vadd.f32 %v667, %v676
        %v680 = vadd.f32 %v668, %v676
        %v681 = vadd.f32 %v669, %v676
        %v682 = vadd.f32 %v670, %v676
        %v683 = vadd.f32 %v671, %v676
        %v684 = vadd.f32 %v672, %v676
        %v685 = vadd.f32 %v673, %v676
        %v686 = vmax.f32 %v678, 0.0
        %v687 = vmax.f32 %v679, 0.0
        %v688 = vmax.f32 %v680, 0.0
        %v689 = vmax.f32 %v681, 0.0
        %v690 = vmax.f32 %v682, 0.0
        %v691 = vmax.f32 %v683, 0.0
        %v692 = vmax.f32 %v684, 0.0
        %v693 = vmax.f32 %v685, 0.0
        %694 = vst [vmem:[%s352] sm:$0xff] %v686
        %695 = vst [vmem:[%s352 + $0x8] sm:$0xff] %v687
        %696 = vst [vmem:[%s352 + $0x10] sm:$0xff] %v688
        %697 = vst [vmem:[%s352 + $0x18] sm:$0xff] %v689
        %698 = vst [vmem:[%s352 + $0x20] sm:$0xff] %v690
        %699 = vst [vmem:[%s352 + $0x28] sm:$0xff] %v691
        %700 = vst [vmem:[%s352 + $0x30] sm:$0xff] %v692
        %701 = vst [vmem:[%s352 + $0x38] sm:$0xff] %v693
        %v702 = vadd.f32 %v686, %v687
        %v703 = vadd.f32 %v702, %v688
        %v704 = vadd.f32 %v703, %v689
        %v705 = vadd.f32 %v704, %v690
        %v706 = vadd.f32 %v705, %v691
        %v707 = vadd.f32 %v706, %v692
        %v708 = vadd.f32 %v707, %v693
        %v709 = vrot.slane %v708, 4
        %v710 = vadd.f32 %v708, %v709
        %v711 = vrot.slane %v710, 2
        %v712 = vadd.f32 %v710, %v711
        %v713 = vrot.slane %v712, 1
        %v714 = vadd.f32 %v712, %v713
        %v715 = vmul.f32 %v714, 0.015625
        %716 = vst [vmem:[%s335] sm:$0x1] %v715
        %v717 = vld [vmem:[%s3] sm:$0xff]
        %v718 = vld [vmem:[%s3 + $0x8] sm:$0xff]
        %v719 = vld [vmem:[%s3 + $0x10] sm:$0xff]
        %v720 = vld [vmem:[%s3 + $0x18] sm:$0xff]
        %v721 = vld [vmem:[%s3 + $0x20] sm:$0xff]
        %v722 = vld [vmem:[%s3 + $0x28] sm:$0xff]
        %v723 = vld [vmem:[%s3 + $0x30] sm:$0xff]
        %v724 = vld [vmem:[%s3 + $0x38] sm:$0xff]
        %v725 = vld [vmem:[%s3 + $0x40] sm:$0xff]
        %v726 = vld [vmem:[%s3 + $0x48] sm:$0xff]
        %v727 = vld [vmem:[%s3 + $0x50] sm:$0xff]
        %v728 = vld [vmem:[%s3 + $0x58] sm:$0xff]
        %v729 = vld [vmem:[%s3 + $0x60] sm:$0xff]
        %v730 = vld [vmem:[%s3 + $0x68] sm:$0xff]
        %v731 = vld [vmem:[%s3 + $0x70] sm:$0xff]
        %v732 = vld [vmem:[%s3 + $0x78] sm:$0xff]
        %v733 = vld [vmem:[%s4] sm:$0x1]
        %v735 = vperm.slane %v733, 0
        %737 = vmatpush.msra.mxu0 %v732
        %738 = vmatpush.msra.mxu0 %v731
        %739 = vmatpush.msra.mxu0 %v730
        %740 = vmatpush.msra.mxu0 %v729
        %741 = vmatpush.msra.mxu0 %v728
        %742 = vmatpush.msra.mxu0 %v727
        %743 = vmatpush.msra.mxu0 %v726
        %744 = vmatpush.msra.mxu0 %v725
        %745 = vmatpush.msra.mxu0 %v724
        %746 = vmatpush.msra.mxu0 %v723
        %747 = vmatpush.msra.mxu0 %v722
        %748 = vmatpush.msra.mxu0 %v721
        %749 = vmatpush.msra.mxu0 %v720
        %750 = vmatpush.msra.mxu0 %v719
        %751 = vmatpush.msra.mxu0 %v718
        %752 = vmatpush.msra.mxu0 %v717
        %753 = vmatmul.f32.gmra.mxu0 %v686
        %v754 = vpop.f32.mrf.mxu0
        %v755 = vadd.f32 %v735, %v754
        %756 = vmatmul.f32.gmra.mxu0 %v687
        %v757 = vpop.f32.mrf.mxu0
        %v758 = vadd.f32 %v735, %v757
        %759 = vmatmul.f32.gmra.mxu0 %v688
        %v760 = vpop.f32.mrf.mxu0
        %v761 = vadd.f32 %v735, %v760
        %762 = vmatmul.f32.gmra.mxu0 %v689
        %v763 = vpop.f32.mrf.mxu0
        %v764 = vadd.f32 %v735, %v763
        %765 = vmatmul.f32.gmra.mxu0 %v690
        %v766 = vpop.f32.mrf.mxu0
        %v767 = vadd.f32 %v735, %v766
        %768 = vmatmul.f32.gmra.mxu0 %v691
        %v769 = vpop.f32.mrf.mxu0
        %v770 = vadd.f32 %v735, %v769
        %771 = vmatmul.f32.gmra.mxu0 %v692
        %v772 = vpop.f32.mrf.mxu0
        %v773 = vadd.f32 %v735, %v772
        %774 = vmatmul.f32.gmra.mxu0 %v693
        %v775 = vpop.f32.mrf.mxu0
        %v776 = vadd.f32 %v735, %v775
        %777 = vdwg.mxu0
        %v778 = vmax.f32 %v755, 0.0
        %v779 = vmax.f32 %v758, 0.0
        %v780 = vmax.f32 %v761, 0.0
        %v781 = vmax.f32 %v764, 0.0
        %v782 = vmax.f32 %v767, 0.0
        %v783 = vmax.f32 %v770, 0.0
        %v784 = vmax.f32 %v773, 0.0
        %v785 = vmax.f32 %v776, 0.0
        %v786 = vld [vmem:[%s5] sm:$0xff]
        %v787 = vld [vmem:[%s5 + $0x8] sm:$0xff]
        %v788 = vld [vmem:[%s5 + $0x10] sm:$0xff]
        %v789 = vld [vmem:[%s5 + $0x18] sm:$0xff]
        %v790 = vld [vmem:[%s5 + $0x20] sm:$0xff]
        %v791 = vld [vmem:[%s5 + $0x28] sm:$0xff]
        %v792 = vld [vmem:[%s5 + $0x30] sm:$0xff]
        %v793 = vld [vmem:[%s5 + $0x38] sm:$0xff]
        %v794 = vld [vmem:[%s5 + $0x40] sm:$0xff]
        %v795 = vld [vmem:[%s5 + $0x48] sm:$0xff]
        %v796 = vld [vmem:[%s5 + $0x50] sm:$0xff]
        %v797 = vld [vmem:[%s5 + $0x58] sm:$0xff]
        %v798 = vld [vmem:[%s5 + $0x60] sm:$0xff]
        %v799 = vld [vmem:[%s5 + $0x68] sm:$0xff]
        %v800 = vld [vmem:[%s5 + $0x70] sm:$0xff]
        %v801 = vld [vmem:[%s5 + $0x78] sm:$0xff]
        %v802 = vld [vmem:[%s6] sm:$0x1]
        %v804 = vperm.slane %v802, 0
        %806 = vmatpush.msra.mxu0 %v801
        %807 = vmatpush.msra.mxu0 %v800
        %808 = vmatpush.msra.mxu0 %v799
        %809 = vmatpush.msra.mxu0 %v798
        %810 = vmatpush.msra.mxu0 %v797
        %811 = vmatpush.msra.mxu0 %v796
        %812 = vmatpush.msra.mxu0 %v795
        %813 = vmatpush.msra.mxu0 %v794
        %814 = vmatpush.msra.mxu0 %v793
        %815 = vmatpush.msra.mxu0 %v792
        %816 = vmatpush.msra.mxu0 %v791
        %817 = vmatpush.msra.mxu0 %v790
        %818 = vmatpush.msra.mxu0 %v789
        %819 = vmatpush.msra.mxu0 %v788
        %820 = vmatpush.msra.mxu0 %v787
        %821 = vmatpush.msra.mxu0 %v786
        %822 = vmatmul.f32.gmra.mxu0 %v778
        %v823 = vpop.f32.mrf.mxu0
        %v824 = vadd.f32 %v804, %v823
        %825 = vmatmul.f32.gmra.mxu0 %v779
        %v826 = vpop.f32.mrf.mxu0
        %v827 = vadd.f32 %v804, %v826
        %828 = vmatmul.f32.gmra.mxu0 %v780
        %v829 = vpop.f32.mrf.mxu0
        %v830 = vadd.f32 %v804, %v829
        %831 = vmatmul.f32.gmra.mxu0 %v781
        %v832 = vpop.f32.mrf.mxu0
        %v833 = vadd.f32 %v804, %v832
        %834 = vmatmul.f32.gmra.mxu0 %v782
        %v835 = vpop.f32.mrf.mxu0
        %v836 = vadd.f32 %v804, %v835
        %837 = vmatmul.f32.gmra.mxu0 %v783
        %v838 = vpop.f32.mrf.mxu0
        %v839 = vadd.f32 %v804, %v838
        %840 = vmatmul.f32.gmra.mxu0 %v784
        %v841 = vpop.f32.mrf.mxu0
        %v842 = vadd.f32 %v804, %v841
        %843 = vmatmul.f32.gmra.mxu0 %v785
        %v844 = vpop.f32.mrf.mxu0
        %v845 = vadd.f32 %v804, %v844
        %846 = vdwg.mxu0
        %v847 = vmul.f32 %v824, %v824
        %v848 = vmul.f32 %v827, %v827
        %v849 = vmul.f32 %v830, %v830
        %v850 = vmul.f32 %v833, %v833
        %v851 = vmul.f32 %v836, %v836
        %v852 = vmul.f32 %v839, %v839
        %v853 = vmul.f32 %v842, %v842
        %v854 = vmul.f32 %v845, %v845
        %855 = vadd.xlane.f32.xlu0 %v847
        %v856 = vpop.xlane.xlu0 %855
        %857 = vadd.xlane.f32.xlu0 %v848
        %v858 = vpop.xlane.xlu0 %857
        %859 = vadd.xlane.f32.xlu0 %v849
        %v860 = vpop.xlane.xlu0 %859
        %861 = vadd.xlane.f32.xlu0 %v850
        %v862 = vpop.xlane.xlu0 %861
        %863 = vadd.xlane.f32.xlu0 %v851
        %v864 = vpop.xlane.xlu0 %863
        %865 = vadd.xlane.f32.xlu0 %v852
        %v866 = vpop.xlane.xlu0 %865
        %867 = vadd.xlane.f32.xlu0 %v853
        %v868 = vpop.xlane.xlu0 %867
        %869 = vadd.xlane.f32.xlu0 %v854
        %v870 = vpop.xlane.xlu0 %869
        %v871 = vmax.f32 %v856, 1e-24
        %v872 = vmax.f32 %v858, 1e-24
        %v873 = vmax.f32 %v860, 1e-24
        %v874 = vmax.f32 %v862, 1e-24
        %v875 = vmax.f32 %v864, 1e-24
        %v876 = vmax.f32 %v866, 1e-24
        %v877 = vmax.f32 %v868, 1e-24
        %v878 = vmax.f32 %v870, 1e-24
        %v879 = vrsqrt.pop %v871
        %v880 = vmul.f32 %v879, %v871
        %v881 = vmul.f32 %v880, %v879
        %v882 = vmul.f32 0.5, %v881
        %v883 = vsub.f32 1.5, %v882
        %v884 = vmul.f32 %v879, %v883
        %vm885 = vweird.f32 %v871
        %vm886 = vweird.f32 %v879
        %vm887 = vmor %vm885, %vm886
        %v888 = vsel %vm887, %v879, %v884
        %v889 = vrsqrt.pop %v872
        %v890 = vmul.f32 %v889, %v872
        %v891 = vmul.f32 %v890, %v889
        %v892 = vmul.f32 0.5, %v891
        %v893 = vsub.f32 1.5, %v892
        %v894 = vmul.f32 %v889, %v893
        %vm895 = vweird.f32 %v872
        %vm896 = vweird.f32 %v889
        %vm897 = vmor %vm895, %vm896
        %v898 = vsel %vm897, %v889, %v894
        %v899 = vrsqrt.pop %v873
        %v900 = vmul.f32 %v899, %v873
        %v901 = vmul.f32 %v900, %v899
        %v902 = vmul.f32 0.5, %v901
        %v903 = vsub.f32 1.5, %v902
        %v904 = vmul.f32 %v899, %v903
        %vm905 = vweird.f32 %v873
        %vm906 = vweird.f32 %v899
        %vm907 = vmor %vm905, %vm906
        %v908 = vsel %vm907, %v899, %v904
        %v909 = vrsqrt.pop %v874
        %v910 = vmul.f32 %v909, %v874
        %v911 = vmul.f32 %v910, %v909
        %v912 = vmul.f32 0.5, %v911
        %v913 = vsub.f32 1.5, %v912
        %v914 = vmul.f32 %v909, %v913
        %vm915 = vweird.f32 %v874
        %vm916 = vweird.f32 %v909
        %vm917 = vmor %vm915, %vm916
        %v918 = vsel %vm917, %v909, %v914
        %v919 = vrsqrt.pop %v875
        %v920 = vmul.f32 %v919, %v875
        %v921 = vmul.f32 %v920, %v919
        %v922 = vmul.f32 0.5, %v921
        %v923 = vsub.f32 1.5, %v922
        %v924 = vmul.f32 %v919, %v923
        %vm925 = vweird.f32 %v875
        %vm926 = vweird.f32 %v919
        %vm927 = vmor %vm925, %vm926
        %v928 = vsel %vm927, %v919, %v924
        %v929 = vrsqrt.pop %v876
        %v930 = vmul.f32 %v929, %v876
        %v931 = vmul.f32 %v930, %v929
        %v932 = vmul.f32 0.5, %v931
        %v933 = vsub.f32 1.5, %v932
        %v934 = vmul.f32 %v929, %v933
        %vm935 = vweird.f32 %v876
        %vm936 = vweird.f32 %v929
        %vm937 = vmor %vm935, %vm936
        %v938 = vsel %vm937, %v929, %v934
        %v939 = vrsqrt.pop %v877
        %v940 = vmul.f32 %v939, %v877
        %v941 = vmul.f32 %v940, %v939
        %v942 = vmul.f32 0.5, %v941
        %v943 = vsub.f32 1.5, %v942
        %v944 = vmul.f32 %v939, %v943
        %vm945 = vweird.f32 %v877
        %vm946 = vweird.f32 %v939
        %vm947 = vmor %vm945, %vm946
        %v948 = vsel %vm947, %v939, %v944
        %v949 = vrsqrt.pop %v878
        %v950 = vmul.f32 %v949, %v878
        %v951 = vmul.f32 %v950, %v949
        %v952 = vmul.f32 0.5, %v951
        %v953 = vsub.f32 1.5, %v952
        %v954 = vmul.f32 %v949, %v953
        %vm955 = vweird.f32 %v878
        %vm956 = vweird.f32 %v949
        %vm957 = vmor %vm955, %vm956
        %v958 = vsel %vm957, %v949, %v954
        %v959 = vmul.f32 %v824, %v888
        %v960 = vmul.f32 %v827, %v898
        %v961 = vmul.f32 %v830, %v908
        %v962 = vmul.f32 %v833, %v918
        %v963 = vmul.f32 %v836, %v928
        %v964 = vmul.f32 %v839, %v938
        %v965 = vmul.f32 %v842, %v948
        %v966 = vmul.f32 %v845, %v958
        %967 = vst [vmem:[%s342] sm:$0xff] %v959
        %968 = vst [vmem:[%s342 + $0x8] sm:$0xff] %v960
        %969 = vst [vmem:[%s342 + $0x10] sm:$0xff] %v961
        %970 = vst [vmem:[%s342 + $0x18] sm:$0xff] %v962
        %971 = vst [vmem:[%s342 + $0x20] sm:$0xff] %v963
        %972 = vst [vmem:[%s342 + $0x28] sm:$0xff] %v964
        %973 = vst [vmem:[%s342 + $0x30] sm:$0xff] %v965
        %974 = vst [vmem:[%s342 + $0x38] sm:$0xff] %v966
        %p975 = scmp.lt.s32.totalorder %s27, 1
        %s976 = scalar_select %p975, %s27, 1
        %s977 = smul.addr %s976, 8
        %s978 = smul.addr %s977, 8
        %s979 = scalar_lea.vmem %s7, %s978
        %s980 = sand.u32 %s213, 1
        %s981 = scalar_lea.sflag [#allocation3], %s980
        %s982 = sand.u32 %s213, 1
        %s983 = scalar_lea.vmem [#allocation2], %s982
        %s984 = sand.u32 %s239, 1
        %s985 = scalar_lea.sflag [#allocation5], %s984
        %s986 = sand.u32 %s239, 1
        %s987 = smul.addr %s986, 64
        %s988 = scalar_lea.vmem [#allocation4], %s987
        // Predicated region
        $region49: #{image_model_forward.1} parent=47 // pred_check
          %p989 = pneg %p197
        $region50: #{image_model_forward.1} parent=47 // pred_check_branch
          %991 = sbr.rel (%p989) target = $region52
        $region51: #{image_model_forward.1} parent=47 // pred_region
          _
        $region52: #{image_model_forward.1} parent=47 // pred_fallthru
          _
        // Predicated region
        $region53: #{image_model_forward.1} parent=47 // pred_check
          %p992 = pneg %p223
        $region54: #{image_model_forward.1} parent=47 // pred_check_branch
          %994 = sbr.rel (%p992) target = $region56
        $region55: #{image_model_forward.1} parent=47 // pred_region
          %996 = vsyncadd %s981, 0
          %s997 = scalar_lea.hbm %s8, %s27
          %s999 = sshll.u32 %s983, 4
          %s1000 = int_to_ptr.vmem [resolvable:$true] %s999
          %s1001 = sshll.u32 %s997, 4
          %s1002 = int_to_ptr.hbm [resolvable:$true] %s1001
          %1004 = dma.vmem_to_hbm [thread:$0]  %s1000, 16, %s1002, %s981
        $region56: #{image_model_forward.1} parent=47 // pred_fallthru
          _
        // Predicated region
        $region57: #{image_model_forward.1} parent=47 // pred_check
          %p1005 = pneg %p249
        $region58: #{image_model_forward.1} parent=47 // pred_check_branch
          %1007 = sbr.rel (%p1005) target = $region60
        $region59: #{image_model_forward.1} parent=47 // pred_region
          %1009 = vsyncadd %s985, 0
          %s1010 = smul.addr %s27, 8
          %s1011 = smul.addr %s1010, 8
          %s1012 = scalar_lea.hbm %s9, %s1011
          %s1013 = sshll.u32 %s988, 4
          %s1014 = int_to_ptr.vmem [resolvable:$true] %s1013
          %s1015 = sshll.u32 %s1012, 4
          %s1016 = int_to_ptr.hbm [resolvable:$true] %s1015
          %1021 = dma.vmem_to_hbm [thread:$0]  %s1014, 1024, %s1016, %s985, 128, 128, 8
        $region60: #{image_model_forward.1} parent=47 // pred_fallthru
          _
      $region48: #{image_model_forward.1} parent=5 // pred_fallthru
        _
      %p1022 = scmp.le.s32.totalorder 2, %s22
      // Predicated region
      $region61: #{image_model_forward.1} parent=5 // pred_check
        %p1023 = pneg %p1022
      $region62: #{image_model_forward.1} parent=5 // pred_check_branch
        %1025 = sbr.rel (%p1023) target = $region64
      $region63: #{image_model_forward.1} parent=5 // pred_region
        %s1026 = ssub.s32 %s22, 2
        // Predicated region
        $region65: #{image_model_forward.1} parent=63 // pred_check
          %p1027 = pneg %p203
        $region66: #{image_model_forward.1} parent=63 // pred_check_branch
          %1029 = sbr.rel (%p1027) target = $region68
        $region67: #{image_model_forward.1} parent=63 // pred_region
          %p1030 = scmp.lt.s32.totalorder %s28, 1
          %s1031 = scalar_select %p1030, %s28, 1
          %s1032 = smul.addr %s1031, 8
          %s1033 = smul.addr %s1032, 8
          %s1034 = scalar_lea.vmem %s7, %s1033
        $region68: #{image_model_forward.1} parent=63 // pred_fallthru
          _
        // Predicated region
        $region69: #{image_model_forward.1} parent=63 // pred_check
          %p1035 = pneg %p229
        $region70: #{image_model_forward.1} parent=63 // pred_check_branch
          %1037 = sbr.rel (%p1035) target = $region72
        $region71: #{image_model_forward.1} parent=63 // pred_region
          %s1038 = sand.u32 %s214, 1
          %s1039 = scalar_lea.sflag [#allocation3], %s1038
          %s1040 = sand.u32 %s214, 1
          %s1041 = scalar_lea.vmem [#allocation2], %s1040
          %1043 = dma.done %s1039, 16
        $region72: #{image_model_forward.1} parent=63 // pred_fallthru
          _
        // Predicated region
        $region73: #{image_model_forward.1} parent=63 // pred_check
          %p1044 = pneg %p255
        $region74: #{image_model_forward.1} parent=63 // pred_check_branch
          %1046 = sbr.rel (%p1044) target = $region76
        $region75: #{image_model_forward.1} parent=63 // pred_region
          %s1047 = sand.u32 %s240, 1
          %s1048 = scalar_lea.sflag [#allocation5], %s1047
          %s1049 = sand.u32 %s240, 1
          %s1050 = smul.addr %s1049, 64
          %s1051 = scalar_lea.vmem [#allocation4], %s1050
          %1053 = dma.done %s1048, 1024
        $region76: #{image_model_forward.1} parent=63 // pred_fallthru
          _
      $region64: #{image_model_forward.1} parent=5 // pred_fallthru
        _
    $region6: #{image_model_forward.1} parent=1 // loop_footer
      %s26 = sadd.s32 1, %s22
    $region7: #{image_model_forward.1} parent=1 // loop_footer_branch
      %21 = sbr.rel target = $region3
    $region8: #{image_model_forward.1} parent=1 // loop_exit
      _
    %1054 = vsyncpa [#allocation3], 1
    %s1055 = scalar_lea.sflag [#allocation3], 1
    %1056 = vsyncpa %s1055, 1
    %1057 = vsyncpa [#allocation5], 1
    %s1058 = scalar_lea.sflag [#allocation5], 1
    %1059 = vsyncpa %s1058, 1

</llo_original>
